<compile_context>
chip_gen: v7x
topology: tpu7x:2x2x1
jax: 0.10.0
libtpu: 0.0.40
codegen_flags: <defaults>
</compile_context>

<pallas_src>
import functools

import jax
import jax.numpy as jnp
from jax.experimental import pallas as pl
from jax.experimental.pallas import tpu as pltpu


# --------------------------------------------------------------------------- #
# Kernels
# --------------------------------------------------------------------------- #
def _sigmoid(x):
    # Exact identity sigmoid(x) == 0.5*(1 + tanh(x/2)); tanh lowers to the EUP
    # slot (no f32 divide on the VALU).
    return 0.5 * (jnp.tanh(0.5 * x) + 1.0)


def _lstm_gates(gates, c_prev, hidden):
    Hp = hidden
    i_g = _sigmoid(gates[:, 0 * Hp:1 * Hp])
    f_g = _sigmoid(gates[:, 1 * Hp:2 * Hp])
    g_g = jnp.tanh(gates[:, 2 * Hp:3 * Hp])
    o_g = _sigmoid(gates[:, 3 * Hp:4 * Hp])
    c_t = f_g * c_prev + i_g * g_g
    h_t = o_g * jnp.tanh(c_t)
    return h_t, c_t


def _cell_kernel(x_ref, h_ref, c_ref, wx_ref, wh_ref, b_ref,
                 h_out_ref, c_out_ref, *, hidden):
    w_dtype = wx_ref.dtype
    gates = (
        jnp.dot(x_ref[...].astype(w_dtype), wx_ref[...],
                preferred_element_type=jnp.float32)
        + jnp.dot(h_ref[...].astype(w_dtype), wh_ref[...],
                  preferred_element_type=jnp.float32)
        + b_ref[...]
    )
    h_t, c_t = _lstm_gates(gates, c_ref[...].astype(jnp.float32), hidden)
    h_out_ref[...] = h_t.astype(h_out_ref.dtype)
    c_out_ref[...] = c_t.astype(c_out_ref.dtype)


def _seq_kernel(x_ref, h0_ref, c0_ref, wx_ref, wh_ref, b_ref,
                hseq_ref, c_fin_ref, h_sc, c_sc, *, hidden):
    t = pl.program_id(1)

    @pl.when(t == 0)
    def _():
        h_sc[...] = h0_ref[...].astype(jnp.float32)
        c_sc[...] = c0_ref[...].astype(jnp.float32)

    w_dtype = wx_ref.dtype
    gates = (
        jnp.dot(x_ref[...].astype(w_dtype), wx_ref[...],
                preferred_element_type=jnp.float32)
        + jnp.dot(h_sc[...].astype(w_dtype), wh_ref[...],
                  preferred_element_type=jnp.float32)
        + b_ref[...]
    )
    h_t, c_t = _lstm_gates(gates, c_sc[...], hidden)
    h_sc[...] = h_t
    c_sc[...] = c_t
    hseq_ref[...] = h_t.astype(hseq_ref.dtype)

    @pl.when(t == pl.num_programs(1) - 1)
    def _():
        c_fin_ref[...] = c_t.astype(c_fin_ref.dtype)


# --------------------------------------------------------------------------- #
# Wrapper-side layout helpers (plain-JAX glue; layout only, no compute moved)
# --------------------------------------------------------------------------- #
def _round_up(n, m):
    return ((n + m - 1) // m) * m


def _prepare_weights(params, input_size, hidden_size, weight_dtype):
    F, H = input_size, hidden_size
    Hp = _round_up(H, 128)  # lane-dense gate blocks / outputs

    # Structural guard for the dead-attention folding: the V projection must
    # produce a single column so that softmax over dim=1 is over length 1.
    assert params["v_w"].shape[0] == 1, (
        "Attention energy is no longer a single column; the softmax-over-"
        "length-1 degeneracy this kernel relies on does not hold.")

    w_ih_t = params["w_ih"].astype(jnp.float32).T          # [F+1, 4H]
    # attn == 1  =>  context = x @ ones(F,1); fold the context column into wx.
    wx = w_ih_t[:F] + jnp.broadcast_to(w_ih_t[F][None, :], (F, 4 * H))
    wh = params["w_hh"].astype(jnp.float32).T              # [H, 4H]
    bias = (params["b_ih"] + params["b_hh"]).astype(jnp.float32)[None, :]

    def pad_gate_cols(w):                                  # [..., 4H] -> [..., 4Hp]
        if Hp == H:
            return w
        w4 = w.reshape(w.shape[:-1] + (4, H))
        w4 = jnp.pad(w4, [(0, 0)] * (w4.ndim - 1) + [(0, Hp - H)])
        return w4.reshape(w.shape[:-1] + (4 * Hp,))

    wx = pad_gate_cols(wx)                                  # [F, 4Hp]
    wh = pad_gate_cols(wh)                                  # [H, 4Hp]
    if Hp != H:
        wh = jnp.pad(wh, ((0, Hp - H), (0, 0)))             # [Hp, 4Hp]
    bias = pad_gate_cols(bias)                               # [1, 4Hp]
    return wx.astype(weight_dtype), wh.astype(weight_dtype), bias, Hp


def _pad_lanes(a, Hp):
    H = a.shape[-1]
    if H == Hp:
        return a
    return jnp.pad(a, [(0, 0)] * (a.ndim - 1) + [(0, Hp - H)])


def _pick_batch_tile(batch, feat, hidden_p, vmem_budget_bytes=24 << 20):
    """Largest sublane-aligned tile dividing the batch, preferring >=2 grid
    blocks (keeps both v7x TensorCores busy) and keeping the double-buffered
    activation blocks inside a VMEM budget."""
    def act_bytes(tb):
        return 2 * tb * (feat + 4 * hidden_p) * 4
    candidates = [tb for tb in (1024, 512, 256, 128, 64, 32, 16, 8)
                  if batch % tb == 0 and act_bytes(tb) <= vmem_budget_bytes]
    for tb in candidates:
        if batch // tb >= 2:
            return tb
    if candidates:
        return candidates[0]
    return batch  # tiny / ragged batch: one block equal to the full array


def _vmem_limit_bytes(tb, feat, hidden_p, weight_dtype):
    w_item = jnp.dtype(weight_dtype).itemsize
    act_block = tb * (feat + 4 * hidden_p) * 4          # x + h + c + 2 outs (f32 bound)
    weights = (feat + hidden_p) * 4 * hidden_p * w_item + 4 * hidden_p * 4
    temps = 4 * tb * 4 * hidden_p * 4                   # gates + working set
    est = 2 * act_block + weights + temps + (4 << 20)
    # v5e scoped default is only 16 MiB; v7x physical ceiling is 64 MiB.
    return int(min(64 << 20, max(32 << 20, est)))


_WEIGHT_BUFFERING = pl.Buffered(1)  # constant-index weights: single VMEM buffer


# --------------------------------------------------------------------------- #
# Public entry points
# --------------------------------------------------------------------------- #
def attention_lstm_cell(x_t, h_prev, c_prev, params, *,
                        weight_dtype=jnp.bfloat16, donate_state=False):
    """Single AttentionLSTMCell step.  Returns (h_t [B,H] in x dtype,
    c_t [B,H] in float32)."""
    B, F = x_t.shape
    H = h_prev.shape[1]
    wx, wh, bias, Hp = _prepare_weights(params, F, H, weight_dtype)
    h_in = _pad_lanes(h_prev, Hp)
    c_in = _pad_lanes(c_prev.astype(jnp.float32), Hp)     # cell state stays f32

    TB = _pick_batch_tile(B, F, Hp)
    grid = (B // TB,)

    act = lambda cols: pl.BlockSpec((TB, cols), lambda i: (i, 0))
    wspec = lambda rows: pl.BlockSpec((rows, 4 * Hp), lambda i: (0, 0),
                                      pipeline_mode=_WEIGHT_BUFFERING)

    in_specs = [act(F), act(Hp), act(Hp), wspec(F), wspec(Hp), wspec(1)]
    out_specs = (act(Hp), act(Hp))
    out_shape = (jax.ShapeDtypeStruct((B, Hp), x_t.dtype),
                 jax.ShapeDtypeStruct((B, Hp), jnp.float32))

    w_item = jnp.dtype(weight_dtype).itemsize
    cost = pl.CostEstimate(
        flops=int(2 * B * (F + Hp) * 4 * Hp + 10 * B * Hp),
        transcendentals=int(5 * B * Hp),
        bytes_accessed=int((x_t.size + 2 * B * Hp) * x_t.dtype.itemsize
                           + 3 * B * Hp * 4
                           + (wx.size + wh.size) * w_item + bias.size * 4),
    )

    # Optional in-place state update (caller must allow destructive update).
    aliases = {1: 0, 2: 1} if donate_state else {}

    h_out, c_out = pl.pallas_call(
        functools.partial(_cell_kernel, hidden=Hp),
        grid=grid,
        in_specs=in_specs,
        out_specs=out_specs,
        out_shape=out_shape,
        compiler_params=pltpu.CompilerParams(
            # TODO(synk): on v7x, if profiling shows only one TensorCore busy,
            # switch this axis to pltpu.CORE_PARALLEL.
            dimension_semantics=("parallel",),
            vmem_limit_bytes=_vmem_limit_bytes(TB, F, Hp, weight_dtype),
        ),
        cost_estimate=cost,
        input_output_aliases=aliases,
    )(x_t, h_in, c_in, wx, wh, bias)

    if Hp != H:
        h_out = h_out[:, :H]
        c_out = c_out[:, :H]
    return h_out, c_out


def attention_lstm_sequence(x_seq, h0, c0, params, *, weight_dtype=jnp.bfloat16):
    """Runs the cell over a [T, B, F] sequence inside ONE pallas_call: weights
    are DMA'd once, h/c are carried in VMEM scratch across the time grid axis.
    Returns (h_seq [T,B,H] in x dtype, (h_T, c_T)) with c_T in float32."""
    T, B, F = x_seq.shape
    H = h0.shape[1]
    wx, wh, bias, Hp = _prepare_weights(params, F, H, weight_dtype)
    h_in = _pad_lanes(h0, Hp)
    c_in = _pad_lanes(c0.astype(jnp.float32), Hp)

    TB = _pick_batch_tile(B, F, Hp)
    grid = (B // TB, T)  # batch outer ("parallel"), time innermost ("arbitrary")

    act = lambda cols: pl.BlockSpec((TB, cols), lambda i, t: (i, 0))
    wspec = lambda rows: pl.BlockSpec((rows, 4 * Hp), lambda i, t: (0, 0),
                                      pipeline_mode=_WEIGHT_BUFFERING)

    in_specs = [
        pl.BlockSpec((None, TB, F), lambda i, t: (t, i, 0)),    # x_t time slice
        act(Hp), act(Hp),                                       # h0, c0
        wspec(F), wspec(Hp), wspec(1),                          # wx, wh, bias
    ]
    out_specs = (
        pl.BlockSpec((None, TB, Hp), lambda i, t: (t, i, 0)),   # per-step h
        act(Hp),                                                # final c
    )
    out_shape = (jax.ShapeDtypeStruct((T, B, Hp), x_seq.dtype),
                 jax.ShapeDtypeStruct((B, Hp), jnp.float32))

    w_item = jnp.dtype(weight_dtype).itemsize
    cost = pl.CostEstimate(
        flops=int(T * (2 * B * (F + Hp) * 4 * Hp + 10 * B * Hp)),
        transcendentals=int(5 * T * B * Hp),
        bytes_accessed=int(x_seq.size * x_seq.dtype.itemsize
                           + (T + 1) * B * Hp * x_seq.dtype.itemsize
                           + 2 * B * Hp * 4
                           + (wx.size + wh.size) * w_item + bias.size * 4),
    )

    h_seq, c_fin = pl.pallas_call(
        functools.partial(_seq_kernel, hidden=Hp),
        grid=grid,
        in_specs=in_specs,
        out_specs=out_specs,
        out_shape=out_shape,
        scratch_shapes=[pltpu.VMEM((TB, Hp), jnp.float32),   # h carry
                        pltpu.VMEM((TB, Hp), jnp.float32)],  # c carry
        compiler_params=pltpu.CompilerParams(
            dimension_semantics=("parallel", "arbitrary"),
            vmem_limit_bytes=_vmem_limit_bytes(TB, F, Hp, weight_dtype),
        ),
        cost_estimate=cost,
    )(x_seq, h_in, c_in, wx, wh, bias)

    if Hp != H:
        h_seq = h_seq[..., :H]
        c_fin = c_fin[:, :H]
    return h_seq, (h_seq[-1], c_fin)


# --------------------------------------------------------------------------- #
# Parameters + pure-JAX reference (mirrors the PyTorch forward exactly)
# --------------------------------------------------------------------------- #
def init_params(key, input_size, hidden_size):
    ks = jax.random.split(key, 10)
    F, H = input_size, hidden_size

    def u(k, shape, scale):
        return jax.random.uniform(k, shape, jnp.float32, -scale, scale)

    s_h = 1.0 / jnp.sqrt(H)
    s_f = 1.0 / jnp.sqrt(F)
    return {
        # Attention (present in the module; provably no effect on the output).
        "wq": u(ks[0], (H, H), s_h), "bq": u(ks[1], (H,), s_h),
        "wk": u(ks[2], (H, F), s_f), "bk": u(ks[3], (H,), s_f),
        "v_w": u(ks[4], (1, H), s_h), "v_b": u(ks[5], (1,), s_h),
        # LSTMCell(F + 1, H)
        "w_ih": u(ks[6], (4 * H, F + 1), s_h),
        "w_hh": u(ks[7], (4 * H, H), s_h),
        "b_ih": u(ks[8], (4 * H,), s_h),
        "b_hh": u(ks[9], (4 * H,), s_h),
    }


def _reference_cell(x_t, h_prev, c_prev, p):
    hi = jax.lax.Precision.HIGHEST
    query = jnp.dot(h_prev, p["wq"].T, precision=hi) + p["bq"]
    keys = jnp.dot(x_t, p["wk"].T, precision=hi) + p["bk"]
    energy = jnp.dot(jnp.tanh(query + keys), p["v_w"].T, precision=hi) + p["v_b"]
    attn = jax.nn.softmax(energy, axis=1)                    # [B,1] -> exactly 1.0
    context = jnp.sum(x_t * attn, axis=1)[:, None]
    lstm_in = jnp.concatenate([x_t, context], axis=1)
    gates = (jnp.dot(lstm_in, p["w_ih"].T, precision=hi) + p["b_ih"]
             + jnp.dot(h_prev, p["w_hh"].T, precision=hi) + p["b_hh"])
    H = h_prev.shape[1]
    i, f, g, o = (gates[:, :H], gates[:, H:2 * H],
                  gates[:, 2 * H:3 * H], gates[:, 3 * H:])
    c_t = jax.nn.sigmoid(f) * c_prev + jax.nn.sigmoid(i) * jnp.tanh(g)
    h_t = jax.nn.sigmoid(o) * jnp.tanh(c_t)
    return h_t, c_t


def _reference_sequence(x_seq, h0, c0, p):
    h, c = h0, c0
    hs = []
    for t in range(x_seq.shape[0]):
        h, c = _reference_cell(x_seq[t], h, c, p)
        hs.append(h)
    return jnp.stack(hs, axis=0), (h, c)


# --------------------------------------------------------------------------- #
# Demo / self-test
# --------------------------------------------------------------------------- #
if __name__ == "__main__":
    key = jax.random.PRNGKey(0)
    k1, k2, k3 = jax.random.split(key, 3)

    # ---- nominal small shapes (exercises the H<128 lane-padding path) ------
    B, F, H = 2, 16, 32
    kx, kh, kc, kp = jax.random.split(k1, 4)
    x = jax.random.normal(kx, (B, F), jnp.float32)
    h = jax.random.normal(kh, (B, H), jnp.float32)
    c = jax.random.normal(kc, (B, H), jnp.float32)
    params = init_params(kp, F, H)
    h_ref, c_ref = _reference_cell(x, h, c, params)

    # f32 weights.
    h_f32, c_f32 = attention_lstm_cell(x, h, c, params, weight_dtype=jnp.float32)
    jax.block_until_ready((h_f32, c_f32))
    assert jnp.allclose(h_f32, h_ref, atol=2e-2, rtol=2e-2)
    assert jnp.allclose(c_f32, c_ref, atol=2e-2, rtol=2e-2)

    # Default bf16 weights (f32 MXU accumulation, f32 state).
    h_bf, c_bf = attention_lstm_cell(x, h, c, params)
    jax.block_until_ready((h_bf, c_bf))
    assert jnp.allclose(h_bf, h_ref, atol=3e-2, rtol=3e-2)
    assert jnp.allclose(c_bf, c_ref, atol=3e-2, rtol=3e-2)

    # ---- lane-aligned H, multi-block batch grid (>=2 blocks for v7x) -------
    B2, F2, H2 = 256, 16, 128
    kk = jax.random.split(k2, 4)
    x2 = jax.random.normal(kk[0], (B2, F2), jnp.float32)
    h2 = jax.random.normal(kk[1], (B2, H2), jnp.float32)
    c2 = jax.random.normal(kk[2], (B2, H2), jnp.float32)
    p2 = init_params(kk[3], F2, H2)
    h2_out, c2_out = attention_lstm_cell(x2, h2, c2, p2)
    jax.block_until_ready((h2_out, c2_out))
    h2_ref, c2_ref = _reference_cell(x2, h2, c2, p2)
    assert jnp.allclose(h2_out, h2_ref, atol=3e-2, rtol=3e-2)
    assert jnp.allclose(c2_out, c2_ref, atol=3e-2, rtol=3e-2)

    # ---- time loop hoisted into the kernel (h/c carried in VMEM scratch) ---
    T, B3, F3, H3 = 6, 16, 16, 32
    ks = jax.random.split(k3, 4)
    xs = jax.random.normal(ks[0], (T, B3, F3), jnp.float32)
    h3 = jax.random.normal(ks[1], (B3, H3), jnp.float32)
    c3 = jax.random.normal(ks[2], (B3, H3), jnp.float32)
    p3 = init_params(ks[3], F3, H3)
    hseq, (hT, cT) = attention_lstm_sequence(xs, h3, c3, p3)
    jax.block_until_ready((hseq, hT, cT))
    hseq_ref, (hT_ref, cT_ref) = _reference_sequence(xs, h3, c3, p3)
    assert jnp.allclose(hseq, hseq_ref, atol=5e-2, rtol=5e-2)
    assert jnp.allclose(cT, cT_ref, atol=5e-2, rtol=5e-2)

    print("KERNEL_OK")
</pallas_src>

<mosaic_0001>
module attributes {stable_mosaic.version = 11 : i64} {
  func.func @_cell_kernel(%arg0: i32, %arg1: memref<2x16xf32, #tpu.memory_space<vmem>>, %arg2: memref<2x128xf32, #tpu.memory_space<vmem>>, %arg3: memref<2x128xf32, #tpu.memory_space<vmem>>, %arg4: memref<16x512xf32, #tpu.memory_space<vmem>>, %arg5: memref<128x512xf32, #tpu.memory_space<vmem>>, %arg6: memref<1x512xf32, #tpu.memory_space<vmem>>, %arg7: memref<2x128xf32, #tpu.memory_space<vmem>>, %arg8: memref<2x128xf32, #tpu.memory_space<vmem>>) attributes {dimension_semantics = [#tpu.dimension_semantics<parallel>], iteration_bounds = array<i64: 1>, scalar_prefetch = 0 : i64, scratch_operands = 0 : i64, tpu.core_type = #tpu.core_type<tc>, window_params = [{transform_indices = @transform_0, window_bounds = array<i64: 2, 16>}, {transform_indices = @transform_1, window_bounds = array<i64: 2, 128>}, {transform_indices = @transform_2, window_bounds = array<i64: 2, 128>}, {pipeline_mode = #tpu.pipeline_mode<synchronous>, transform_indices = @transform_3, window_bounds = array<i64: 16, 512>}, {pipeline_mode = #tpu.pipeline_mode<synchronous>, transform_indices = @transform_4, window_bounds = array<i64: 128, 512>}, {pipeline_mode = #tpu.pipeline_mode<synchronous>, transform_indices = @transform_5, window_bounds = array<i64: 1, 512>}, {transform_indices = @transform_6, window_bounds = array<i64: 2, 128>}, {transform_indices = @transform_7, window_bounds = array<i64: 2, 128>}]} {
    %c0 = arith.constant 0 : index
    %c0_0 = arith.constant 0 : index
    %0 = vector.load %arg1[%c0, %c0_0] : memref<2x16xf32, #tpu.memory_space<vmem>>, vector<2x16xf32>
    %c0_1 = arith.constant 0 : index
    %c0_2 = arith.constant 0 : index
    %1 = vector.load %arg4[%c0_1, %c0_2] : memref<16x512xf32, #tpu.memory_space<vmem>>, vector<16x512xf32>
    %cst = arith.constant dense<0.000000e+00> : vector<2x512xf32>
    %2 = tpu.matmul %0, %1, %cst {dimension_numbers = #tpu.dot_dimension_numbers<[1], [0], [0], [1], [0, 0, 1, 1], [], []>} : vector<2x16xf32>, vector<16x512xf32>, vector<2x512xf32> -> vector<2x512xf32>
    %c0_3 = arith.constant 0 : index
    %c0_4 = arith.constant 0 : index
    %3 = vector.load %arg2[%c0_3, %c0_4] : memref<2x128xf32, #tpu.memory_space<vmem>>, vector<2x128xf32>
    %c0_5 = arith.constant 0 : index
    %c0_6 = arith.constant 0 : index
    %4 = vector.load %arg5[%c0_5, %c0_6] : memref<128x512xf32, #tpu.memory_space<vmem>>, vector<128x512xf32>
    %cst_7 = arith.constant dense<0.000000e+00> : vector<2x512xf32>
    %5 = tpu.matmul %3, %4, %cst_7 {dimension_numbers = #tpu.dot_dimension_numbers<[1], [0], [0], [1], [0, 0, 1, 1], [], []>} : vector<2x128xf32>, vector<128x512xf32>, vector<2x512xf32> -> vector<2x512xf32>
    %6 = arith.addf %2, %5 : vector<2x512xf32>
    %c0_8 = arith.constant 0 : index
    %c0_9 = arith.constant 0 : index
    %7 = vector.load %arg6[%c0_8, %c0_9] : memref<1x512xf32, #tpu.memory_space<vmem>>, vector<1x512xf32>
    %8 = vector.broadcast %7 : vector<1x512xf32> to vector<2x512xf32>
    %9 = arith.addf %6, %8 : vector<2x512xf32>
    %c0_10 = arith.constant 0 : index
    %c0_11 = arith.constant 0 : index
    %10 = vector.load %arg3[%c0_10, %c0_11] : memref<2x128xf32, #tpu.memory_space<vmem>>, vector<2x128xf32>
    %11 = vector.extract_strided_slice %9 {offsets = [0, 0], sizes = [2, 128], strides = [1, 1]} : vector<2x512xf32> to vector<2x128xf32>
    %cst_12 = arith.constant 5.000000e-01 : f32
    %12 = vector.broadcast %cst_12 : f32 to vector<2x128xf32>
    %13 = arith.mulf %12, %11 : vector<2x128xf32>
    %14 = math.tanh %13 : vector<2x128xf32>
    %cst_13 = arith.constant 1.000000e+00 : f32
    %15 = vector.broadcast %cst_13 : f32 to vector<2x128xf32>
    %16 = arith.addf %14, %15 : vector<2x128xf32>
    %cst_14 = arith.constant 5.000000e-01 : f32
    %17 = vector.broadcast %cst_14 : f32 to vector<2x128xf32>
    %18 = arith.mulf %17, %16 : vector<2x128xf32>
    %19 = vector.extract_strided_slice %9 {offsets = [0, 128], sizes = [2, 128], strides = [1, 1]} : vector<2x512xf32> to vector<2x128xf32>
    %cst_15 = arith.constant 5.000000e-01 : f32
    %20 = vector.broadcast %cst_15 : f32 to vector<2x128xf32>
    %21 = arith.mulf %20, %19 : vector<2x128xf32>
    %22 = math.tanh %21 : vector<2x128xf32>
    %cst_16 = arith.constant 1.000000e+00 : f32
    %23 = vector.broadcast %cst_16 : f32 to vector<2x128xf32>
    %24 = arith.addf %22, %23 : vector<2x128xf32>
    %cst_17 = arith.constant 5.000000e-01 : f32
    %25 = vector.broadcast %cst_17 : f32 to vector<2x128xf32>
    %26 = arith.mulf %25, %24 : vector<2x128xf32>
    %27 = vector.extract_strided_slice %9 {offsets = [0, 256], sizes = [2, 128], strides = [1, 1]} : vector<2x512xf32> to vector<2x128xf32>
    %28 = math.tanh %27 : vector<2x128xf32>
    %29 = vector.extract_strided_slice %9 {offsets = [0, 384], sizes = [2, 128], strides = [1, 1]} : vector<2x512xf32> to vector<2x128xf32>
    %cst_18 = arith.constant 5.000000e-01 : f32
    %30 = vector.broadcast %cst_18 : f32 to vector<2x128xf32>
    %31 = arith.mulf %30, %29 : vector<2x128xf32>
    %32 = math.tanh %31 : vector<2x128xf32>
    %cst_19 = arith.constant 1.000000e+00 : f32
    %33 = vector.broadcast %cst_19 : f32 to vector<2x128xf32>
    %34 = arith.addf %32, %33 : vector<2x128xf32>
    %cst_20 = arith.constant 5.000000e-01 : f32
    %35 = vector.broadcast %cst_20 : f32 to vector<2x128xf32>
    %36 = arith.mulf %35, %34 : vector<2x128xf32>
    %37 = arith.mulf %26, %10 : vector<2x128xf32>
    %38 = arith.mulf %18, %28 : vector<2x128xf32>
    %39 = arith.addf %37, %38 : vector<2x128xf32>
    %40 = math.tanh %39 : vector<2x128xf32>
    %41 = arith.mulf %36, %40 : vector<2x128xf32>
    %c0_21 = arith.constant 0 : index
    %c0_22 = arith.constant 0 : index
    %42 = vector.load %arg7[%c0_21, %c0_22] : memref<2x128xf32, #tpu.memory_space<vmem>>, vector<2x128xf32>
    tpu.vector_store %arg7[%c0_21, %c0_22], %41 {strides = array<i32>} : memref<2x128xf32, #tpu.memory_space<vmem>>, vector<2x128xf32>,
    %c0_23 = arith.constant 0 : index
    %c0_24 = arith.constant 0 : index
    %43 = vector.load %arg8[%c0_23, %c0_24] : memref<2x128xf32, #tpu.memory_space<vmem>>, vector<2x128xf32>
    tpu.vector_store %arg8[%c0_23, %c0_24], %39 {strides = array<i32>} : memref<2x128xf32, #tpu.memory_space<vmem>>, vector<2x128xf32>,
    return
  }
  func.func @transform_0(%arg0: i32) -> (i32, i32) {
    %c0_i32 = arith.constant 0 : i32
    %c0_i32_0 = arith.constant 0 : i32
    return %arg0, %c0_i32 : i32, i32
  }
  func.func @transform_1(%arg0: i32) -> (i32, i32) {
    %c0_i32 = arith.constant 0 : i32
    %c0_i32_0 = arith.constant 0 : i32
    return %arg0, %c0_i32 : i32, i32
  }
  func.func @transform_2(%arg0: i32) -> (i32, i32) {
    %c0_i32 = arith.constant 0 : i32
    %c0_i32_0 = arith.constant 0 : i32
    return %arg0, %c0_i32 : i32, i32
  }
  func.func @transform_3(%arg0: i32) -> (i32, i32) {
    %c0_i32 = arith.constant 0 : i32
    %c0_i32_0 = arith.constant 0 : i32
    %c0_i32_1 = arith.constant 0 : i32
    return %c0_i32, %c0_i32_0 : i32, i32
  }
  func.func @transform_4(%arg0: i32) -> (i32, i32) {
    %c0_i32 = arith.constant 0 : i32
    %c0_i32_0 = arith.constant 0 : i32
    %c0_i32_1 = arith.constant 0 : i32
    return %c0_i32, %c0_i32_0 : i32, i32
  }
  func.func @transform_5(%arg0: i32) -> (i32, i32) {
    %c0_i32 = arith.constant 0 : i32
    %c0_i32_0 = arith.constant 0 : i32
    %c0_i32_1 = arith.constant 0 : i32
    return %c0_i32, %c0_i32_0 : i32, i32
  }
  func.func @transform_6(%arg0: i32) -> (i32, i32) {
    %c0_i32 = arith.constant 0 : i32
    %c0_i32_0 = arith.constant 0 : i32
    return %arg0, %c0_i32 : i32, i32
  }
  func.func @transform_7(%arg0: i32) -> (i32, i32) {
    %c0_i32 = arith.constant 0 : i32
    %c0_i32_0 = arith.constant 0 : i32
    return %arg0, %c0_i32 : i32, i32
  }
}

</mosaic_0001>

<llo_original>
// kernel: tpu_custom_call.1
$region0: #{tpu_custom_call.1}
  #allocation0 [shape = 'u32[]', space=smem, size = 0x4, offset = 0x4, fixed_abs, tag = 'smem constant byte address 0x4 - core index']
  #allocation1 [shape = 'u32[144,128]{1,0:T(1,128)}', space=vmem, size = 0x12000, scoped, tag = 'internal scratch']
  %s0 = inlined_call_operand.hbm [shape: f32[2,16], index: 0, kind: input, shape index: {}]
  %s1 = inlined_call_operand.vmem [shape: f32[2,128], index: 1, kind: input, shape index: {}]
  %s2 = inlined_call_operand.hbm [shape: f32[2,128], index: 2, kind: input, shape index: {}]
  %s3 = inlined_call_operand.hbm [shape: f32[16,512], index: 3, kind: input, shape index: {}]
  %s4 = inlined_call_operand.hbm [shape: f32[128,512], index: 4, kind: input, shape index: {}]
  %s5 = inlined_call_operand.vmem [shape: f32[1,512], index: 5, kind: input, shape index: {}]
  %s6 = inlined_call_operand.hbm [shape: f32[2,128], index: 6, kind: output, shape index: {0}]
  %s7 = inlined_call_operand.hbm [shape: f32[2,128], index: 7, kind: output, shape index: {1}]
  %8 = xla_tuple %s6, %s7
  %s9 = sld [smem:[#allocation0]]
  $region58: #{tpu_custom_call.1} parent=0
    _
  %s11 = ssub.s32 1, %s9
  %s12 = scalar_select 0, %s11, %s9
  $region1: #{tpu_custom_call.1} parent=0
    #allocation2 [shape = 'u8[1024]{0}', space=vmem, size = 0x400, scoped, tag = 'input window, operand 0, single buffered']
    #allocation3 [shape = 's32[1]{0}', space=sflag, size = 0x4, scoped, tag = 'scoped memory for tpu_custom_call.1']
    #allocation4 [shape = 's32[1]{0}', space=sflag, size = 0x4, scoped, tag = 'scoped memory for tpu_custom_call.1']
    #allocation5 [shape = 'u8[1024]{0}', space=vmem, size = 0x400, scoped, tag = 'input window, operand 2, single buffered']
    #allocation6 [shape = 's32[1]{0}', space=sflag, size = 0x4, scoped, tag = 'scoped memory for tpu_custom_call.1']
    #allocation7 [shape = 'u8[32768]{0}', space=vmem, size = 0x8000, scoped, tag = 'input window, operand 3, single buffered']
    #allocation8 [shape = 'u8[262144]{0}', space=vmem, size = 0x40000, scoped, tag = 'input window, operand 4, single buffered']
    #allocation9 [shape = 's32[1]{0}', space=sflag, size = 0x4, scoped, tag = 'scoped memory for tpu_custom_call.1']
    #allocation10 [shape = 'u8[1024]{0}', space=vmem, size = 0x400, scoped, tag = 'output window, operand 0, single buffered']
    #allocation11 [shape = 'u8[1024]{0}', space=vmem, size = 0x400, scoped, tag = 'output window, operand 1, single buffered']
    #allocation12 [shape = 's32[1]{0}', space=sflag, size = 0x4, scoped, tag = 'scoped memory for tpu_custom_call.1']
    %13 = vsyncpa [#allocation3], 0
    %14 = vsyncpa [#allocation6], 0
    %15 = vsyncpa [#allocation9], 0
    %16 = vsyncpa [#allocation4], 0
    %17 = vsyncpa [#allocation12], 0
    // Predicated region
    $region2: #{tpu_custom_call.1} parent=1 // pred_check
      _
    $region3: #{tpu_custom_call.1} parent=1 // pred_check_branch
      %19 = sbr.rel (0) target = $region5
    $region4: #{tpu_custom_call.1} parent=1 // pred_region
      %s21 = ssub.s32 32, 32
      %22 = vsyncadd [#allocation3], %s21
      %s24 = sshll.u32 [#allocation2], 4
      %s25 = int_to_ptr.vmem [resolvable:$true] %s24
      %27 = dma.hbm_to_vmem [thread:$0]  %s0, 32, %s25, [#allocation3]
    $region5: #{tpu_custom_call.1} parent=1 // pred_fallthru
      _
    // Predicated region
    $region6: #{tpu_custom_call.1} parent=1 // pred_check
      _
    $region7: #{tpu_custom_call.1} parent=1 // pred_check_branch
      %29 = sbr.rel (0) target = $region9
    $region8: #{tpu_custom_call.1} parent=1 // pred_region
      _
    $region9: #{tpu_custom_call.1} parent=1 // pred_fallthru
      _
    // Predicated region
    $region10: #{tpu_custom_call.1} parent=1 // pred_check
      _
    $region11: #{tpu_custom_call.1} parent=1 // pred_check_branch
      %31 = sbr.rel (0) target = $region13
    $region12: #{tpu_custom_call.1} parent=1 // pred_region
      %s33 = ssub.s32 32, 32
      %34 = vsyncadd [#allocation6], %s33
      %s36 = sshll.u32 [#allocation5], 4
      %s37 = int_to_ptr.vmem [resolvable:$true] %s36
      %39 = dma.hbm_to_vmem [thread:$0]  %s2, 32, %s37, [#allocation6]
    $region13: #{tpu_custom_call.1} parent=1 // pred_fallthru
      _
    // Predicated region
    $region14: #{tpu_custom_call.1} parent=1 // pred_check
      _
    $region15: #{tpu_custom_call.1} parent=1 // pred_check_branch
      %41 = sbr.rel (0) target = $region17
    $region16: #{tpu_custom_call.1} parent=1 // pred_region
      %s43 = ssub.s32 1024, 1024
      %44 = vsyncadd [#allocation6], %s43
      %s45 = sshll.u32 [#allocation7], 4
      %s46 = int_to_ptr.vmem [resolvable:$true] %s45
      %51 = dma.hbm_to_vmem [thread:$0]  %s3, 1024, %s46, [#allocation6], 512, 512, 32
    $region17: #{tpu_custom_call.1} parent=1 // pred_fallthru
      _
    // Predicated region
    $region18: #{tpu_custom_call.1} parent=1 // pred_check
      _
    $region19: #{tpu_custom_call.1} parent=1 // pred_check_branch
      %53 = sbr.rel (0) target = $region21
    $region20: #{tpu_custom_call.1} parent=1 // pred_region
      %s55 = ssub.s32 8192, 8192
      %56 = vsyncadd [#allocation9], %s55
      %s57 = sshll.u32 [#allocation8], 4
      %s58 = int_to_ptr.vmem [resolvable:$true] %s57
      %63 = dma.hbm_to_vmem [thread:$0]  %s4, 8192, %s58, [#allocation9], 512, 512, 32
    $region21: #{tpu_custom_call.1} parent=1 // pred_fallthru
      _
    // Predicated region
    $region22: #{tpu_custom_call.1} parent=1 // pred_check
      _
    $region23: #{tpu_custom_call.1} parent=1 // pred_check_branch
      %65 = sbr.rel (0) target = $region25
    $region24: #{tpu_custom_call.1} parent=1 // pred_region
      _
    $region25: #{tpu_custom_call.1} parent=1 // pred_fallthru
      _
    // Predicated region
    $region26: #{tpu_custom_call.1} parent=1 // pred_check
      _
    $region27: #{tpu_custom_call.1} parent=1 // pred_check_branch
      %67 = sbr.rel (0) target = $region29
    $region28: #{tpu_custom_call.1} parent=1 // pred_region
      %68 = dma.done [#allocation3], 32
    $region29: #{tpu_custom_call.1} parent=1 // pred_fallthru
      _
    // Predicated region
    $region30: #{tpu_custom_call.1} parent=1 // pred_check
      _
    $region31: #{tpu_custom_call.1} parent=1 // pred_check_branch
      %70 = sbr.rel (0) target = $region33
    $region32: #{tpu_custom_call.1} parent=1 // pred_region
      %71 = dma.done [#allocation6], 32
    $region33: #{tpu_custom_call.1} parent=1 // pred_fallthru
      _
    // Predicated region
    $region34: #{tpu_custom_call.1} parent=1 // pred_check
      _
    $region35: #{tpu_custom_call.1} parent=1 // pred_check_branch
      %73 = sbr.rel (0) target = $region37
    $region36: #{tpu_custom_call.1} parent=1 // pred_region
      %74 = dma.done [#allocation6], 1024
    $region37: #{tpu_custom_call.1} parent=1 // pred_fallthru
      _
    // Predicated region
    $region38: #{tpu_custom_call.1} parent=1 // pred_check
      _
    $region39: #{tpu_custom_call.1} parent=1 // pred_check_branch
      %76 = sbr.rel (0) target = $region41
    $region40: #{tpu_custom_call.1} parent=1 // pred_region
      %77 = dma.done [#allocation9], 8192
    $region41: #{tpu_custom_call.1} parent=1 // pred_fallthru
      _
    %v78 = vld [vmem:[#allocation2] sm:$0x3]
    %v79 = vld [vmem:[#allocation7] sm:$0xff]
    %v80 = vld [vmem:[#allocation7 + $0x8] sm:$0xff]
    %v81 = vld [vmem:[#allocation7 + $0x10] sm:$0xff]
    %v82 = vld [vmem:[#allocation7 + $0x18] sm:$0xff]
    %v83 = vld [vmem:[#allocation7 + $0x20] sm:$0xff]
    %v84 = vld [vmem:[#allocation7 + $0x28] sm:$0xff]
    %v85 = vld [vmem:[#allocation7 + $0x30] sm:$0xff]
    %v86 = vld [vmem:[#allocation7 + $0x38] sm:$0xff]
    %v87 = vld [vmem:[%s1] sm:$0x3]
    %v88 = vld [vmem:[#allocation8] sm:$0xff]
    %v89 = vld [vmem:[#allocation8 + $0x8] sm:$0xff]
    %v90 = vld [vmem:[#allocation8 + $0x10] sm:$0xff]
    %v91 = vld [vmem:[#allocation8 + $0x18] sm:$0xff]
    %v92 = vld [vmem:[#allocation8 + $0x20] sm:$0xff]
    %v93 = vld [vmem:[#allocation8 + $0x28] sm:$0xff]
    %v94 = vld [vmem:[#allocation8 + $0x30] sm:$0xff]
    %v95 = vld [vmem:[#allocation8 + $0x38] sm:$0xff]
    %v96 = vld [vmem:[#allocation8 + $0x40] sm:$0xff]
    %v97 = vld [vmem:[#allocation8 + $0x48] sm:$0xff]
    %v98 = vld [vmem:[#allocation8 + $0x50] sm:$0xff]
    %v99 = vld [vmem:[#allocation8 + $0x58] sm:$0xff]
    %v100 = vld [vmem:[#allocation8 + $0x60] sm:$0xff]
    %v101 = vld [vmem:[#allocation8 + $0x68] sm:$0xff]
    %v102 = vld [vmem:[#allocation8 + $0x70] sm:$0xff]
    %v103 = vld [vmem:[#allocation8 + $0x78] sm:$0xff]
    %v104 = vld [vmem:[#allocation8 + $0x80] sm:$0xff]
    %v105 = vld [vmem:[#allocation8 + $0x88] sm:$0xff]
    %v106 = vld [vmem:[#allocation8 + $0x90] sm:$0xff]
    %v107 = vld [vmem:[#allocation8 + $0x98] sm:$0xff]
    %v108 = vld [vmem:[#allocation8 + $0xa0] sm:$0xff]
    %v109 = vld [vmem:[#allocation8 + $0xa8] sm:$0xff]
    %v110 = vld [vmem:[#allocation8 + $0xb0] sm:$0xff]
    %v111 = vld [vmem:[#allocation8 + $0xb8] sm:$0xff]
    %v112 = vld [vmem:[#allocation8 + $0xc0] sm:$0xff]
    %v113 = vld [vmem:[#allocation8 + $0xc8] sm:$0xff]
    %v114 = vld [vmem:[#allocation8 + $0xd0] sm:$0xff]
    %v115 = vld [vmem:[#allocation8 + $0xd8] sm:$0xff]
    %v116 = vld [vmem:[#allocation8 + $0xe0] sm:$0xff]
    %v117 = vld [vmem:[#allocation8 + $0xe8] sm:$0xff]
    %v118 = vld [vmem:[#allocation8 + $0xf0] sm:$0xff]
    %v119 = vld [vmem:[#allocation8 + $0xf8] sm:$0xff]
    %v120 = vld [vmem:[#allocation8 + $0x100] sm:$0xff]
    %v121 = vld [vmem:[#allocation8 + $0x108] sm:$0xff]
    %v122 = vld [vmem:[#allocation8 + $0x110] sm:$0xff]
    %v123 = vld [vmem:[#allocation8 + $0x118] sm:$0xff]
    %v124 = vld [vmem:[#allocation8 + $0x120] sm:$0xff]
    %v125 = vld [vmem:[#allocation8 + $0x128] sm:$0xff]
    %v126 = vld [vmem:[#allocation8 + $0x130] sm:$0xff]
    %v127 = vld [vmem:[#allocation8 + $0x138] sm:$0xff]
    %v128 = vld [vmem:[#allocation8 + $0x140] sm:$0xff]
    %v129 = vld [vmem:[#allocation8 + $0x148] sm:$0xff]
    %v130 = vld [vmem:[#allocation8 + $0x150] sm:$0xff]
    %v131 = vld [vmem:[#allocation8 + $0x158] sm:$0xff]
    %v132 = vld [vmem:[#allocation8 + $0x160] sm:$0xff]
    %v133 = vld [vmem:[#allocation8 + $0x168] sm:$0xff]
    %v134 = vld [vmem:[#allocation8 + $0x170] sm:$0xff]
    %v135 = vld [vmem:[#allocation8 + $0x178] sm:$0xff]
    %v136 = vld [vmem:[#allocation8 + $0x180] sm:$0xff]
    %v137 = vld [vmem:[#allocation8 + $0x188] sm:$0xff]
    %v138 = vld [vmem:[#allocation8 + $0x190] sm:$0xff]
    %v139 = vld [vmem:[#allocation8 + $0x198] sm:$0xff]
    %v140 = vld [vmem:[#allocation8 + $0x1a0] sm:$0xff]
    %v141 = vld [vmem:[#allocation8 + $0x1a8] sm:$0xff]
    %v142 = vld [vmem:[#allocation8 + $0x1b0] sm:$0xff]
    %v143 = vld [vmem:[#allocation8 + $0x1b8] sm:$0xff]
    %v144 = vld [vmem:[#allocation8 + $0x1c0] sm:$0xff]
    %v145 = vld [vmem:[#allocation8 + $0x1c8] sm:$0xff]
    %v146 = vld [vmem:[#allocation8 + $0x1d0] sm:$0xff]
    %v147 = vld [vmem:[#allocation8 + $0x1d8] sm:$0xff]
    %v148 = vld [vmem:[#allocation8 + $0x1e0] sm:$0xff]
    %v149 = vld [vmem:[#allocation8 + $0x1e8] sm:$0xff]
    %v150 = vld [vmem:[#allocation8 + $0x1f0] sm:$0xff]
    %v151 = vld [vmem:[#allocation8 + $0x1f8] sm:$0xff]
    %152 = vmatprep.subr.mxu0 %v89
    %153 = vmatpush1.msra.mxu0 %v88
    %154 = vmatprep.subr.mxu0 %v93
    %155 = vmatpush1.msra.mxu0 %v92
    %156 = vmatprep.subr.mxu0 %v97
    %157 = vmatpush1.msra.mxu0 %v96
    %158 = vmatprep.subr.mxu0 %v101
    %159 = vmatpush1.msra.mxu0 %v100
    %160 = vmatprep.subr.mxu0 %v105
    %161 = vmatpush1.msra.mxu0 %v104
    %162 = vmatprep.subr.mxu0 %v109
    %163 = vmatpush1.msra.mxu0 %v108
    %164 = vmatprep.subr.mxu0 %v113
    %165 = vmatpush1.msra.mxu0 %v112
    %166 = vmatprep.subr.mxu0 %v117
    %167 = vmatpush1.msra.mxu0 %v116
    %168 = vmatprep.subr.mxu0 %v121
    %169 = vmatpush1.msra.mxu0 %v120
    %170 = vmatprep.subr.mxu0 %v125
    %171 = vmatpush1.msra.mxu0 %v124
    %172 = vmatprep.subr.mxu0 %v129
    %173 = vmatpush1.msra.mxu0 %v128
    %174 = vmatprep.subr.mxu0 %v133
    %175 = vmatpush1.msra.mxu0 %v132
    %176 = vmatprep.subr.mxu0 %v137
    %177 = vmatpush1.msra.mxu0 %v136
    %178 = vmatprep.subr.mxu0 %v141
    %179 = vmatpush1.msra.mxu0 %v140
    %180 = vmatprep.subr.mxu0 %v145
    %181 = vmatpush1.msra.mxu0 %v144
    %182 = vmatprep.subr.mxu0 %v149
    %183 = vmatpush1.msra.mxu0 %v148
    %184 = vmatprep.subr.mxu0 0.0
    %185 = vmatpush1.msra.mxu0 0.0
    %186 = vmatprep.subr.mxu0 0.0
    %187 = vmatpush1.msra.mxu0 0.0
    %188 = vmatprep.subr.mxu0 0.0
    %189 = vmatpush1.msra.mxu0 0.0
    %190 = vmatprep.subr.mxu0 0.0
    %191 = vmatpush1.msra.mxu0 0.0
    %192 = vmatprep.subr.mxu0 0.0
    %193 = vmatpush1.msra.mxu0 0.0
    %194 = vmatprep.subr.mxu0 0.0
    %195 = vmatpush1.msra.mxu0 0.0
    %196 = vmatprep.subr.mxu0 0.0
    %197 = vmatpush1.msra.mxu0 0.0
    %198 = vmatprep.subr.mxu0 0.0
    %199 = vmatpush1.msra.mxu0 0.0
    %200 = vmatprep.subr.mxu0 0.0
    %201 = vmatpush1.msra.mxu0 0.0
    %202 = vmatprep.subr.mxu0 0.0
    %203 = vmatpush1.msra.mxu0 0.0
    %204 = vmatprep.subr.mxu0 0.0
    %205 = vmatpush1.msra.mxu0 0.0
    %206 = vmatprep.subr.mxu0 0.0
    %207 = vmatpush1.msra.mxu0 0.0
    %208 = vmatprep.subr.mxu0 0.0
    %209 = vmatpush1.msra.mxu0 0.0
    %210 = vmatprep.subr.mxu0 0.0
    %211 = vmatpush1.msra.mxu0 0.0
    %212 = vmatprep.subr.mxu0 0.0
    %213 = vmatpush1.msra.mxu0 0.0
    %214 = vmatprep.subr.mxu0 0.0
    %215 = vmatpush1.msra.mxu0 0.0
    %216 = vmatprep.mubr.f32.mxu0 0.0
    %217 = vmatmul.mubr.f32.gmra.mrb[0].mxu0 %v87
    %v218 = vpop.f32.mrb[0].mxu0
    %v219 = vadd.f32 0.0, %v218
    %v220 = vpop.f32.mrb[0].mxu0
    %v221 = vadd.f32 0.0, %v220
    %222 = vdwg.mxu0
    %223 = vmatprep.subr.mxu0 %v91
    %224 = vmatpush1.msra.mxu0 %v90
    %225 = vmatprep.subr.mxu0 %v95
    %226 = vmatpush1.msra.mxu0 %v94
    %227 = vmatprep.subr.mxu0 %v99
    %228 = vmatpush1.msra.mxu0 %v98
    %229 = vmatprep.subr.mxu0 %v103
    %230 = vmatpush1.msra.mxu0 %v102
    %231 = vmatprep.subr.mxu0 %v107
    %232 = vmatpush1.msra.mxu0 %v106
    %233 = vmatprep.subr.mxu0 %v111
    %234 = vmatpush1.msra.mxu0 %v110
    %235 = vmatprep.subr.mxu0 %v115
    %236 = vmatpush1.msra.mxu0 %v114
    %237 = vmatprep.subr.mxu0 %v119
    %238 = vmatpush1.msra.mxu0 %v118
    %239 = vmatprep.subr.mxu0 %v123
    %240 = vmatpush1.msra.mxu0 %v122
    %241 = vmatprep.subr.mxu0 %v127
    %242 = vmatpush1.msra.mxu0 %v126
    %243 = vmatprep.subr.mxu0 %v131
    %244 = vmatpush1.msra.mxu0 %v130
    %245 = vmatprep.subr.mxu0 %v135
    %246 = vmatpush1.msra.mxu0 %v134
    %247 = vmatprep.subr.mxu0 %v139
    %248 = vmatpush1.msra.mxu0 %v138
    %249 = vmatprep.subr.mxu0 %v143
    %250 = vmatpush1.msra.mxu0 %v142
    %251 = vmatprep.subr.mxu0 %v147
    %252 = vmatpush1.msra.mxu0 %v146
    %253 = vmatprep.subr.mxu0 %v151
    %254 = vmatpush1.msra.mxu0 %v150
    %255 = vmatprep.subr.mxu0 0.0
    %256 = vmatpush1.msra.mxu0 0.0
    %257 = vmatprep.subr.mxu0 0.0
    %258 = vmatpush1.msra.mxu0 0.0
    %259 = vmatprep.subr.mxu0 0.0
    %260 = vmatpush1.msra.mxu0 0.0
    %261 = vmatprep.subr.mxu0 0.0
    %262 = vmatpush1.msra.mxu0 0.0
    %263 = vmatprep.subr.mxu0 0.0
    %264 = vmatpush1.msra.mxu0 0.0
    %265 = vmatprep.subr.mxu0 0.0
    %266 = vmatpush1.msra.mxu0 0.0
    %267 = vmatprep.subr.mxu0 0.0
    %268 = vmatpush1.msra.mxu0 0.0
    %269 = vmatprep.subr.mxu0 0.0
    %270 = vmatpush1.msra.mxu0 0.0
    %271 = vmatprep.subr.mxu0 0.0
    %272 = vmatpush1.msra.mxu0 0.0
    %273 = vmatprep.subr.mxu0 0.0
    %274 = vmatpush1.msra.mxu0 0.0
    %275 = vmatprep.subr.mxu0 0.0
    %276 = vmatpush1.msra.mxu0 0.0
    %277 = vmatprep.subr.mxu0 0.0
    %278 = vmatpush1.msra.mxu0 0.0
    %279 = vmatprep.subr.mxu0 0.0
    %280 = vmatpush1.msra.mxu0 0.0
    %281 = vmatprep.subr.mxu0 0.0
    %282 = vmatpush1.msra.mxu0 0.0
    %283 = vmatprep.subr.mxu0 0.0
    %284 = vmatpush1.msra.mxu0 0.0
    %285 = vmatprep.subr.mxu0 0.0
    %286 = vmatpush1.msra.mxu0 0.0
    %287 = vmatprep.mubr.f32.mxu0 0.0
    %288 = vmatmul.mubr.f32.gmra.mrb[0].mxu0 %v87
    %v289 = vpop.f32.mrb[0].mxu0
    %v290 = vadd.f32 0.0, %v289
    %v291 = vpop.f32.mrb[0].mxu0
    %v292 = vadd.f32 0.0, %v291
    %293 = vdwg.mxu0
    %vm294 = vcmask 130048
    %v296 = vsel %vm294, %v78, 0
    %298 = vmatprep.subr.mxu0 %v80
    %299 = vmatpush1.msra.mxu0 %v79
    %300 = vmatprep.subr.mxu0 %v84
    %301 = vmatpush1.msra.mxu0 %v83
    %302 = vmatprep.subr.mxu0 0.0
    %303 = vmatpush1.msra.mxu0 0.0
    %304 = vmatprep.subr.mxu0 0.0
    %305 = vmatpush1.msra.mxu0 0.0
    %306 = vmatprep.subr.mxu0 0.0
    %307 = vmatpush1.msra.mxu0 0.0
    %308 = vmatprep.subr.mxu0 0.0
    %309 = vmatpush1.msra.mxu0 0.0
    %310 = vmatprep.subr.mxu0 0.0
    %311 = vmatpush1.msra.mxu0 0.0
    %312 = vmatprep.subr.mxu0 0.0
    %313 = vmatpush1.msra.mxu0 0.0
    %314 = vmatprep.subr.mxu0 0.0
    %315 = vmatpush1.msra.mxu0 0.0
    %316 = vmatprep.subr.mxu0 0.0
    %317 = vmatpush1.msra.mxu0 0.0
    %318 = vmatprep.subr.mxu0 0.0
    %319 = vmatpush1.msra.mxu0 0.0
    %320 = vmatprep.subr.mxu0 0.0
    %321 = vmatpush1.msra.mxu0 0.0
    %322 = vmatprep.subr.mxu0 0.0
    %323 = vmatpush1.msra.mxu0 0.0
    %324 = vmatprep.subr.mxu0 0.0
    %325 = vmatpush1.msra.mxu0 0.0
    %326 = vmatprep.subr.mxu0 0.0
    %327 = vmatpush1.msra.mxu0 0.0
    %328 = vmatprep.subr.mxu0 0.0
    %329 = vmatpush1.msra.mxu0 0.0
    %330 = vmatprep.subr.mxu0 0.0
    %331 = vmatpush1.msra.mxu0 0.0
    %332 = vmatprep.subr.mxu0 0.0
    %333 = vmatpush1.msra.mxu0 0.0
    %334 = vmatprep.subr.mxu0 0.0
    %335 = vmatpush1.msra.mxu0 0.0
    %336 = vmatprep.subr.mxu0 0.0
    %337 = vmatpush1.msra.mxu0 0.0
    %338 = vmatprep.subr.mxu0 0.0
    %339 = vmatpush1.msra.mxu0 0.0
    %340 = vmatprep.subr.mxu0 0.0
    %341 = vmatpush1.msra.mxu0 0.0
    %342 = vmatprep.subr.mxu0 0.0
    %343 = vmatpush1.msra.mxu0 0.0
    %344 = vmatprep.subr.mxu0 0.0
    %345 = vmatpush1.msra.mxu0 0.0
    %346 = vmatprep.subr.mxu0 0.0
    %347 = vmatpush1.msra.mxu0 0.0
    %348 = vmatprep.subr.mxu0 0.0
    %349 = vmatpush1.msra.mxu0 0.0
    %350 = vmatprep.subr.mxu0 0.0
    %351 = vmatpush1.msra.mxu0 0.0
    %352 = vmatprep.subr.mxu0 0.0
    %353 = vmatpush1.msra.mxu0 0.0
    %354 = vmatprep.subr.mxu0 0.0
    %355 = vmatpush1.msra.mxu0 0.0
    %356 = vmatprep.subr.mxu0 0.0
    %357 = vmatpush1.msra.mxu0 0.0
    %358 = vmatprep.subr.mxu0 0.0
    %359 = vmatpush1.msra.mxu0 0.0
    %360 = vmatprep.subr.mxu0 0.0
    %361 = vmatpush1.msra.mxu0 0.0
    %362 = vmatprep.mubr.f32.mxu0 0.0
    %363 = vmatmul.mubr.f32.gmra.mrb[0].mxu0 %v296
    %v364 = vpop.f32.mrb[0].mxu0
    %v365 = vadd.f32 %v219, %v364
    %v366 = vpop.f32.mrb[0].mxu0
    %v367 = vadd.f32 %v221, %v366
    %368 = vdwg.mxu0
    %369 = vmatprep.subr.mxu0 %v82
    %370 = vmatpush1.msra.mxu0 %v81
    %371 = vmatprep.subr.mxu0 %v86
    %372 = vmatpush1.msra.mxu0 %v85
    %373 = vmatprep.subr.mxu0 0.0
    %374 = vmatpush1.msra.mxu0 0.0
    %375 = vmatprep.subr.mxu0 0.0
    %376 = vmatpush1.msra.mxu0 0.0
    %377 = vmatprep.subr.mxu0 0.0
    %378 = vmatpush1.msra.mxu0 0.0
    %379 = vmatprep.subr.mxu0 0.0
    %380 = vmatpush1.msra.mxu0 0.0
    %381 = vmatprep.subr.mxu0 0.0
    %382 = vmatpush1.msra.mxu0 0.0
    %383 = vmatprep.subr.mxu0 0.0
    %384 = vmatpush1.msra.mxu0 0.0
    %385 = vmatprep.subr.mxu0 0.0
    %386 = vmatpush1.msra.mxu0 0.0
    %387 = vmatprep.subr.mxu0 0.0
    %388 = vmatpush1.msra.mxu0 0.0
    %389 = vmatprep.subr.mxu0 0.0
    %390 = vmatpush1.msra.mxu0 0.0
    %391 = vmatprep.subr.mxu0 0.0
    %392 = vmatpush1.msra.mxu0 0.0
    %393 = vmatprep.subr.mxu0 0.0
    %394 = vmatpush1.msra.mxu0 0.0
    %395 = vmatprep.subr.mxu0 0.0
    %396 = vmatpush1.msra.mxu0 0.0
    %397 = vmatprep.subr.mxu0 0.0
    %398 = vmatpush1.msra.mxu0 0.0
    %399 = vmatprep.subr.mxu0 0.0
    %400 = vmatpush1.msra.mxu0 0.0
    %401 = vmatprep.subr.mxu0 0.0
    %402 = vmatpush1.msra.mxu0 0.0
    %403 = vmatprep.subr.mxu0 0.0
    %404 = vmatpush1.msra.mxu0 0.0
    %405 = vmatprep.subr.mxu0 0.0
    %406 = vmatpush1.msra.mxu0 0.0
    %407 = vmatprep.subr.mxu0 0.0
    %408 = vmatpush1.msra.mxu0 0.0
    %409 = vmatprep.subr.mxu0 0.0
    %410 = vmatpush1.msra.mxu0 0.0
    %411 = vmatprep.subr.mxu0 0.0
    %412 = vmatpush1.msra.mxu0 0.0
    %413 = vmatprep.subr.mxu0 0.0
    %414 = vmatpush1.msra.mxu0 0.0
    %415 = vmatprep.subr.mxu0 0.0
    %416 = vmatpush1.msra.mxu0 0.0
    %417 = vmatprep.subr.mxu0 0.0
    %418 = vmatpush1.msra.mxu0 0.0
    %419 = vmatprep.subr.mxu0 0.0
    %420 = vmatpush1.msra.mxu0 0.0
    %421 = vmatprep.subr.mxu0 0.0
    %422 = vmatpush1.msra.mxu0 0.0
    %423 = vmatprep.subr.mxu0 0.0
    %424 = vmatpush1.msra.mxu0 0.0
    %425 = vmatprep.subr.mxu0 0.0
    %426 = vmatpush1.msra.mxu0 0.0
    %427 = vmatprep.subr.mxu0 0.0
    %428 = vmatpush1.msra.mxu0 0.0
    %429 = vmatprep.subr.mxu0 0.0
    %430 = vmatpush1.msra.mxu0 0.0
    %431 = vmatprep.subr.mxu0 0.0
    %432 = vmatpush1.msra.mxu0 0.0
    %433 = vmatprep.mubr.f32.mxu0 0.0
    %434 = vmatmul.mubr.f32.gmra.mrb[0].mxu0 %v296
    %v435 = vpop.f32.mrb[0].mxu0
    %v436 = vadd.f32 %v290, %v435
    %v437 = vpop.f32.mrb[0].mxu0
    %v438 = vadd.f32 %v292, %v437
    %439 = vdwg.mxu0
    %v440 = vld [vmem:[%s5] sm:$0xf]
    %v442 = vlaneseq
    %v443 = vshrl.u32 %v442, 7
    %v444 = vsub.s32 0, %v443
    %v445 = vrot.slane %v440, %v444
    %v446 = vlaneseq
    %v447 = vshrl.u32 %v446, 7
    %v448 = vsub.s32 1, %v447
    %v449 = vrot.slane %v440, %v448
    %v450 = vlaneseq
    %v451 = vshrl.u32 %v450, 7
    %v452 = vsub.s32 2, %v451
    %v453 = vrot.slane %v440, %v452
    %v454 = vlaneseq
    %v455 = vshrl.u32 %v454, 7
    %v456 = vsub.s32 3, %v455
    %v457 = vrot.slane %v440, %v456
    %v462 = vadd.f32 %v365, %v445
    %v463 = vadd.f32 %v367, %v449
    %v464 = vadd.f32 %v436, %v453
    %v465 = vadd.f32 %v438, %v457
    %v466 = vld [vmem:[#allocation5] sm:$0x3]
    %v467 = vmul.f32 %v462, 0.5
    %v468 = vtanh.pop %v467
    %v469 = vadd.f32 %v468, 1.0
    %v470 = vmul.f32 %v469, 0.5
    %v471 = vmul.f32 %v463, 0.5
    %v472 = vtanh.pop %v471
    %v473 = vadd.f32 %v472, 1.0
    %v474 = vmul.f32 %v473, 0.5
    %v475 = vtanh.pop %v464
    %v476 = vmul.f32 %v465, 0.5
    %v477 = vtanh.pop %v476
    %v478 = vadd.f32 %v477, 1.0
    %v479 = vmul.f32 %v478, 0.5
    %v480 = vmul.f32 %v474, %v466
    %v481 = vmul.f32 %v470, %v475
    %v482 = vadd.f32 %v480, %v481
    %v483 = vtanh.pop %v482
    %v484 = vmul.f32 %v479, %v483
    %485 = vst [vmem:[#allocation10] sm:$0x3] %v484
    %486 = vst [vmem:[#allocation11] sm:$0x3] %v482
    // Predicated region
    $region42: #{tpu_custom_call.1} parent=1 // pred_check
      _
    $region43: #{tpu_custom_call.1} parent=1 // pred_check_branch
      %488 = sbr.rel (0) target = $region45
    $region44: #{tpu_custom_call.1} parent=1 // pred_region
      %s490 = ssub.s32 32, 32
      %491 = vsyncadd [#allocation4], %s490
      %s493 = sshll.u32 [#allocation10], 4
      %s494 = int_to_ptr.vmem [resolvable:$true] %s493
      %496 = dma.vmem_to_hbm [thread:$0]  %s494, 32, %s6, [#allocation4]
    $region45: #{tpu_custom_call.1} parent=1 // pred_fallthru
      _
    // Predicated region
    $region46: #{tpu_custom_call.1} parent=1 // pred_check
      _
    $region47: #{tpu_custom_call.1} parent=1 // pred_check_branch
      %498 = sbr.rel (0) target = $region49
    $region48: #{tpu_custom_call.1} parent=1 // pred_region
      %s500 = ssub.s32 32, 32
      %501 = vsyncadd [#allocation12], %s500
      %s503 = sshll.u32 [#allocation11], 4
      %s504 = int_to_ptr.vmem [resolvable:$true] %s503
      %506 = dma.vmem_to_hbm [thread:$0]  %s504, 32, %s7, [#allocation12]
    $region49: #{tpu_custom_call.1} parent=1 // pred_fallthru
      _
    // Predicated region
    $region50: #{tpu_custom_call.1} parent=1 // pred_check
      _
    $region51: #{tpu_custom_call.1} parent=1 // pred_check_branch
      %508 = sbr.rel (0) target = $region53
    $region52: #{tpu_custom_call.1} parent=1 // pred_region
      %509 = dma.done [#allocation4], 32
    $region53: #{tpu_custom_call.1} parent=1 // pred_fallthru
      _
    // Predicated region
    $region54: #{tpu_custom_call.1} parent=1 // pred_check
      _
    $region55: #{tpu_custom_call.1} parent=1 // pred_check_branch
      %511 = sbr.rel (0) target = $region57
    $region56: #{tpu_custom_call.1} parent=1 // pred_region
      %512 = dma.done [#allocation12], 32
    $region57: #{tpu_custom_call.1} parent=1 // pred_fallthru
      _
    %513 = vsyncpa [#allocation3], 1
    %514 = vsyncpa [#allocation6], 1
    %515 = vsyncpa [#allocation9], 1
    %516 = vsyncpa [#allocation4], 1
    %517 = vsyncpa [#allocation12], 1

</llo_original>
